<compile_context>
chip_gen: v7x
topology: tpu7x:2x2x1
jax: 0.10.0
libtpu: 0.0.40
codegen_flags: <defaults>
</compile_context>

<pallas_src>
import math
from functools import partial

import jax
import jax.numpy as jnp
from jax import lax
from jax.experimental import pallas as pl
from jax.experimental.pallas import tpu as pltpu

_INV_SQRT_2PI = 1.0 / math.sqrt(2.0 * math.pi)


def _round_up(x, m):
    return ((x + m - 1) // m) * m


# ------------------------------ fused kernel -------------------------------

def fused_mlp_norm_kernel(zt_ref, z_ref, w1_ref, b1_ref, w2_ref, b2_ref,
                          w3_ref, b3_ref, out_ref, *, bs, wp_pad):
    """One rollout step: 3-layer MLP -> per-batch-row L2 normalize * max_norm.

    zt : SMEM [S] f32          (2*t/T per step, indexed by program_id)
    z  : [1, Din_p] bf16       (padded concat(x,u) row for this step)
    w1 : [Din_p, H_p] bf16     b1 : [1, H_p] f32
    w2 : [H_p, H_p]  bf16      b2 : [1, H_p] f32
    w3 : [H_p, bs*Wp_p] bf16   b3 : [1, bs*Wp_p] f32
    out: [1, bs*Wp_p] f32
    """
    step = pl.program_id(0)

    # max_norm = 20 * N(0,1).pdf(2t/T); exp lands on the (otherwise idle) EUP.
    zt = jnp.full((1, 1), zt_ref[step], jnp.float32)
    mn = 20.0 * _INV_SQRT_2PI * jnp.exp(-0.5 * zt * zt)            # [1, 1]

    # MLP: bf16 operands, f32 MXU accumulation.
    h1 = jnp.dot(z_ref[...], w1_ref[...],
                 preferred_element_type=jnp.float32) + b1_ref[...]
    h1 = jax.nn.sigmoid(h1).astype(jnp.bfloat16)
    h2 = jnp.dot(h1, w2_ref[...],
                 preferred_element_type=jnp.float32) + b2_ref[...]
    h2 = jax.nn.sigmoid(h2).astype(jnp.bfloat16)
    d = jnp.dot(h2, w3_ref[...],
                preferred_element_type=jnp.float32) + b3_ref[...]  # [1, bs*Wp_p]

    # Per-batch-row L2 normalize + max_norm scale on static 128-lane slices.
    # Padded lanes of w3/b3 are exactly zero, so they never bias ssq.
    # NOTE: matches torch divide-by-norm semantics -> NaN if a row is all-zero.
    cols = []
    for b in range(bs):                                  # static unroll, bs small
        d_b = d[:, b * wp_pad:(b + 1) * wp_pad]                    # [1, Wp_p]
        ssq = jnp.sum(d_b * d_b, axis=1, keepdims=True)            # [1, 1]
        cols.append(d_b * (lax.rsqrt(ssq) * mn))
    out_ref[...] = jnp.concatenate(cols, axis=1)    # one wide lane-dense store


# -------------------------------- wrapper -----------------------------------

class MultiHinfDisturbModelPallas:
    """JAX/Pallas port of MultiHinfDisturbModel (forward pass only)."""

    HIDDEN = 50

    def __init__(self, bs, n, m, wp, T, key, weight_dtype=jnp.bfloat16):
        self.bs, self.n, self.m, self.wp, self.T = bs, n, m, wp, T
        self.weight_dtype = weight_dtype
        H = self.HIDDEN
        d_in = bs * (n + m)
        d_out = bs * wp
        self.d_in, self.d_out = d_in, d_out
        self.din_p = _round_up(d_in, 16)       # bf16 sublane multiple
        self.h_p = _round_up(H, 128)
        self.wp_p = _round_up(wp, 128)
        self.out_w = bs * self.wp_p

        # f32 "master" weights, nn.Linear default init, stored [in, out].
        sizes = [(d_in, H), (H, H), (H, d_out)]
        master = []
        for fin, fout in sizes:
            key, kw, kb = jax.random.split(key, 3)
            bound = 1.0 / math.sqrt(fin)
            w = jax.random.uniform(kw, (fin, fout), jnp.float32, -bound, bound)
            b = jax.random.uniform(kb, (fout,), jnp.float32, -bound, bound)
            master.append((w, b))
        self.master = master
        (w1, b1), (w2, b2), (w3, b3) = master

        # Zero-padded, lane-dense, kernel-layout parameters.
        w1p = jnp.zeros((self.din_p, self.h_p), jnp.float32).at[:d_in, :H].set(w1)
        b1p = jnp.zeros((1, self.h_p), jnp.float32).at[0, :H].set(b1)
        w2p = jnp.zeros((self.h_p, self.h_p), jnp.float32).at[:H, :H].set(w2)
        b2p = jnp.zeros((1, self.h_p), jnp.float32).at[0, :H].set(b2)
        # Flat-packed W3: original column b*wp + w  ->  lane b*wp_p + w.
        w3r = w3.reshape(H, bs, wp)
        w3p = (jnp.zeros((self.h_p, bs, self.wp_p), jnp.float32)
               .at[:H, :, :wp].set(w3r)).reshape(self.h_p, self.out_w)
        b3p = (jnp.zeros((bs, self.wp_p), jnp.float32)
               .at[:, :wp].set(b3.reshape(bs, wp))).reshape(1, self.out_w)

        self.w1p = w1p.astype(weight_dtype)
        self.w2p = w2p.astype(weight_dtype)
        self.w3p = w3p.astype(weight_dtype)
        self.b1p, self.b2p, self.b3p = b1p, b2p, b3p

    # ----------------------------- forward ---------------------------------

    def rollout(self, x_seq, u_seq, t_seq):
        """x_seq: [S,bs,n], u_seq: [S,bs,m], t_seq: [S] -> [S,bs,wp]."""
        S = x_seq.shape[0]
        out_w = self.out_w

        # glue: concat + flatten per step, zero-pad, cast to bf16 wrapper-side
        z = jnp.concatenate([x_seq, u_seq], axis=2).reshape(S, 1, self.d_in)
        z_pad = (jnp.zeros((S, 1, self.din_p), jnp.bfloat16)
                 .at[:, :, :self.d_in].set(z.astype(jnp.bfloat16)))
        zt = (2.0 * jnp.asarray(t_seq, jnp.float32).reshape(S)) / self.T

        kernel = partial(fused_mlp_norm_kernel, bs=self.bs, wp_pad=self.wp_p)

        out = pl.pallas_call(
            kernel,
            out_shape=jax.ShapeDtypeStruct((S, 1, out_w), jnp.float32),
            grid_spec=pltpu.PrefetchScalarGridSpec(
                num_scalar_prefetch=0,
                grid=(S,),
                in_specs=[
                    # per-step scalar table (whole array in SMEM)
                    pl.BlockSpec(memory_space=pltpu.MemorySpace.SMEM),
                    # per-step z row (pipelined)
                    pl.BlockSpec((None, 1, self.din_p), lambda s: (s, 0, 0)),
                    # weights: constant block index -> DMA'd once, VMEM-resident
                    pl.BlockSpec((self.din_p, self.h_p), lambda s: (0, 0)),
                    pl.BlockSpec((1, self.h_p), lambda s: (0, 0)),
                    pl.BlockSpec((self.h_p, self.h_p), lambda s: (0, 0)),
                    pl.BlockSpec((1, self.h_p), lambda s: (0, 0)),
                    pl.BlockSpec((self.h_p, out_w), lambda s: (0, 0)),
                    pl.BlockSpec((1, out_w), lambda s: (0, 0)),
                ],
                out_specs=pl.BlockSpec((None, 1, out_w), lambda s: (s, 0, 0)),
            ),
            compiler_params=pltpu.CompilerParams(
                dimension_semantics=("parallel",)),
        )(zt, z_pad, self.w1p, self.b1p, self.w2p, self.b2p, self.w3p, self.b3p)

        return out.reshape(S, self.bs, self.wp_p)[:, :, :self.wp]

    def __call__(self, x, u, t):
        """Single-step forward matching the torch module signature."""
        t_seq = jnp.reshape(jnp.asarray(t, jnp.float32), (1,))
        return self.rollout(x[None], u[None], t_seq)[0]

    # ---------------------------- references --------------------------------

    # reference mirroring the kernel numerics (bf16 weights/activations,
    # f32 accumulation) -> tight tolerance against the kernel
    def reference(self, x_seq, u_seq, t_seq):
        f32 = jnp.float32
        S = x_seq.shape[0]
        z = jnp.concatenate([x_seq, u_seq], axis=2).reshape(S, self.d_in)
        zp = jnp.zeros((S, self.din_p), f32).at[:, :self.d_in].set(z.astype(f32))
        zp = zp.astype(jnp.bfloat16).astype(f32)
        w1, w2, w3 = (self.w1p.astype(f32), self.w2p.astype(f32),
                      self.w3p.astype(f32))
        h1 = jax.nn.sigmoid(zp @ w1 + self.b1p)
        h1 = h1.astype(jnp.bfloat16).astype(f32)
        h2 = jax.nn.sigmoid(h1 @ w2 + self.b2p)
        h2 = h2.astype(jnp.bfloat16).astype(f32)
        d = (h2 @ w3 + self.b3p).reshape(S, self.bs, self.wp_p)
        ssq = jnp.sum(d * d, axis=2, keepdims=True)
        zt = (2.0 * jnp.asarray(t_seq, f32) / self.T).reshape(S, 1, 1)
        mn = 20.0 * _INV_SQRT_2PI * jnp.exp(-0.5 * zt * zt)
        p = d * (lax.rsqrt(ssq) * mn)
        return p[:, :, :self.wp]

    # full-precision reference with the original (unpadded, f32) semantics
    def reference_f32(self, x_seq, u_seq, t_seq):
        (w1, b1), (w2, b2), (w3, b3) = self.master
        S = x_seq.shape[0]
        z = jnp.concatenate([x_seq, u_seq], axis=2).reshape(S, self.d_in)
        z = z.astype(jnp.float32)
        h = jax.nn.sigmoid(z @ w1 + b1)
        h = jax.nn.sigmoid(h @ w2 + b2)
        d = (h @ w3 + b3).reshape(S, self.bs, self.wp)
        nrm = jnp.linalg.norm(d, axis=2, keepdims=True)
        zt = (2.0 * jnp.asarray(t_seq, jnp.float32) / self.T).reshape(S, 1, 1)
        mn = 20.0 * _INV_SQRT_2PI * jnp.exp(-0.5 * zt * zt)
        return d / nrm * mn


if __name__ == "__main__":
    bs, n, m, wp, T = 2, 4, 2, 3, 10.0
    S = 8
    key = jax.random.PRNGKey(0)
    k_model, kx, ku, kxs, kus = jax.random.split(key, 5)

    model = MultiHinfDisturbModelPallas(bs, n, m, wp, T, k_model)

    # --- single step (matches the torch forward signature) ---
    x = jax.random.normal(kx, (bs, n), jnp.float32)
    u = jax.random.normal(ku, (bs, m), jnp.float32)
    t = 1.0
    p = jax.block_until_ready(model(x, u, t))
    assert p.shape == (bs, wp)

    t1 = jnp.array([t], jnp.float32)
    p_ref = model.reference(x[None], u[None], t1)[0]
    assert jnp.allclose(p, p_ref, atol=1e-2, rtol=1e-2), (p, p_ref)
    p_f32 = model.reference_f32(x[None], u[None], t1)[0]
    assert jnp.allclose(p, p_f32, atol=2e-1, rtol=5e-2), (p, p_f32)

    # row norms must equal max_norm = 20 * N(0,1).pdf(2t/T)
    zt0 = 2.0 * t / T
    mn0 = 20.0 * math.exp(-0.5 * zt0 * zt0) * _INV_SQRT_2PI
    assert jnp.allclose(jnp.linalg.norm(p, axis=1), mn0, rtol=1e-3)

    # --- rollout: weights DMA'd once, resident across the time grid axis ---
    xs = jax.random.normal(kxs, (S, bs, n), jnp.float32)
    us = jax.random.normal(kus, (S, bs, m), jnp.float32)
    ts = jnp.linspace(0.0, T, S).astype(jnp.float32)
    ps = jax.block_until_ready(model.rollout(xs, us, ts))
    assert ps.shape == (S, bs, wp)

    ps_ref = model.reference(xs, us, ts)
    assert jnp.allclose(ps, ps_ref, atol=1e-2, rtol=1e-2), (ps, ps_ref)
    ps_f32 = model.reference_f32(xs, us, ts)
    assert jnp.allclose(ps, ps_f32, atol=2e-1, rtol=5e-2), (ps, ps_f32)

    mns = 20.0 * jnp.exp(-0.5 * (2.0 * ts / T) ** 2) * _INV_SQRT_2PI
    assert jnp.allclose(jnp.linalg.norm(ps, axis=2), mns[:, None], rtol=1e-3)

    print("KERNEL_OK")
</pallas_src>

<mosaic_0001>
module attributes {stable_mosaic.version = 11 : i64} {
  func.func @fused_mlp_norm_kernel(%arg0: i32, %arg1: memref<1xf32, #tpu.memory_space<smem>>, %arg2: memref<1x1x16xbf16, #tpu.memory_space<vmem>>, %arg3: memref<16x128xbf16, #tpu.memory_space<vmem>>, %arg4: memref<1x128xf32, #tpu.memory_space<vmem>>, %arg5: memref<128x128xbf16, #tpu.memory_space<vmem>>, %arg6: memref<1x128xf32, #tpu.memory_space<vmem>>, %arg7: memref<128x256xbf16, #tpu.memory_space<vmem>>, %arg8: memref<1x256xf32, #tpu.memory_space<vmem>>, %arg9: memref<1x1x256xf32, #tpu.memory_space<vmem>>) attributes {dimension_semantics = [#tpu.dimension_semantics<parallel>], iteration_bounds = array<i64: 1>, scalar_prefetch = 0 : i64, scratch_operands = 0 : i64, tpu.core_type = #tpu.core_type<tc>, window_params = [{transform_indices = @transform_0, window_bounds = array<i64: 1>}, {transform_indices = @transform_1, window_bounds = array<i64: 1, 1, 16>}, {pipeline_mode = #tpu.pipeline_mode<synchronous>, transform_indices = @transform_2, window_bounds = array<i64: 16, 128>}, {pipeline_mode = #tpu.pipeline_mode<synchronous>, transform_indices = @transform_3, window_bounds = array<i64: 1, 128>}, {pipeline_mode = #tpu.pipeline_mode<synchronous>, transform_indices = @transform_4, window_bounds = array<i64: 128, 128>}, {pipeline_mode = #tpu.pipeline_mode<synchronous>, transform_indices = @transform_5, window_bounds = array<i64: 1, 128>}, {pipeline_mode = #tpu.pipeline_mode<synchronous>, transform_indices = @transform_6, window_bounds = array<i64: 128, 256>}, {pipeline_mode = #tpu.pipeline_mode<synchronous>, transform_indices = @transform_7, window_bounds = array<i64: 1, 256>}, {transform_indices = @transform_8, window_bounds = array<i64: 1, 1, 256>}]} {
    %0 = arith.index_cast %arg0 : i32 to index
    %1 = memref.load %arg1[%0] : memref<1xf32, #tpu.memory_space<smem>>
    %2 = vector.broadcast %1 : f32 to vector<1x1xf32>
    %cst = arith.constant -5.000000e-01 : f32
    %3 = vector.broadcast %cst : f32 to vector<1x1xf32>
    %4 = arith.mulf %3, %2 : vector<1x1xf32>
    %5 = arith.mulf %4, %2 : vector<1x1xf32>
    %6 = math.exp %5 : vector<1x1xf32>
    %cst_0 = arith.constant 7.97884559 : f32
    %7 = vector.broadcast %cst_0 : f32 to vector<1x1xf32>
    %8 = arith.mulf %7, %6 : vector<1x1xf32>
    %c0 = arith.constant 0 : index
    %c0_1 = arith.constant 0 : index
    %c0_2 = arith.constant 0 : index
    %9 = vector.load %arg2[%c0, %c0_1, %c0_2] : memref<1x1x16xbf16, #tpu.memory_space<vmem>>, vector<1x1x16xbf16>
    %10 = vector.shape_cast %9 : vector<1x1x16xbf16> to vector<1x16xbf16>
    %c0_3 = arith.constant 0 : index
    %c0_4 = arith.constant 0 : index
    %11 = vector.load %arg3[%c0_3, %c0_4] : memref<16x128xbf16, #tpu.memory_space<vmem>>, vector<16x128xbf16>
    %cst_5 = arith.constant dense<0.000000e+00> : vector<1x128xf32>
    %12 = tpu.matmul %10, %11, %cst_5 {dimension_numbers = #tpu.dot_dimension_numbers<[1], [0], [0], [1], [0, 0, 1, 1], [], []>} : vector<1x16xbf16>, vector<16x128xbf16>, vector<1x128xf32> -> vector<1x128xf32>
    %c0_6 = arith.constant 0 : index
    %c0_7 = arith.constant 0 : index
    %13 = vector.load %arg4[%c0_6, %c0_7] : memref<1x128xf32, #tpu.memory_space<vmem>>, vector<1x128xf32>
    %14 = arith.addf %12, %13 : vector<1x128xf32>
    %15 = arith.negf %14 : vector<1x128xf32>
    %16 = math.exp %15 : vector<1x128xf32>
    %cst_8 = arith.constant 1.000000e+00 : f32
    %17 = vector.broadcast %cst_8 : f32 to vector<1x128xf32>
    %18 = arith.addf %17, %16 : vector<1x128xf32>
    %19 = arith.divf %17, %18 : vector<1x128xf32>
    %20 = arith.truncf %19 : vector<1x128xf32> to vector<1x128xbf16>
    %c0_9 = arith.constant 0 : index
    %c0_10 = arith.constant 0 : index
    %21 = vector.load %arg5[%c0_9, %c0_10] : memref<128x128xbf16, #tpu.memory_space<vmem>>, vector<128x128xbf16>
    %cst_11 = arith.constant dense<0.000000e+00> : vector<1x128xf32>
    %22 = tpu.matmul %20, %21, %cst_11 {dimension_numbers = #tpu.dot_dimension_numbers<[1], [0], [0], [1], [0, 0, 1, 1], [], []>} : vector<1x128xbf16>, vector<128x128xbf16>, vector<1x128xf32> -> vector<1x128xf32>
    %c0_12 = arith.constant 0 : index
    %c0_13 = arith.constant 0 : index
    %23 = vector.load %arg6[%c0_12, %c0_13] : memref<1x128xf32, #tpu.memory_space<vmem>>, vector<1x128xf32>
    %24 = arith.addf %22, %23 : vector<1x128xf32>
    %25 = arith.negf %24 : vector<1x128xf32>
    %26 = math.exp %25 : vector<1x128xf32>
    %cst_14 = arith.constant 1.000000e+00 : f32
    %27 = vector.broadcast %cst_14 : f32 to vector<1x128xf32>
    %28 = arith.addf %27, %26 : vector<1x128xf32>
    %29 = arith.divf %27, %28 : vector<1x128xf32>
    %30 = arith.truncf %29 : vector<1x128xf32> to vector<1x128xbf16>
    %c0_15 = arith.constant 0 : index
    %c0_16 = arith.constant 0 : index
    %31 = vector.load %arg7[%c0_15, %c0_16] : memref<128x256xbf16, #tpu.memory_space<vmem>>, vector<128x256xbf16>
    %cst_17 = arith.constant dense<0.000000e+00> : vector<1x256xf32>
    %32 = tpu.matmul %30, %31, %cst_17 {dimension_numbers = #tpu.dot_dimension_numbers<[1], [0], [0], [1], [0, 0, 1, 1], [], []>} : vector<1x128xbf16>, vector<128x256xbf16>, vector<1x256xf32> -> vector<1x256xf32>
    %c0_18 = arith.constant 0 : index
    %c0_19 = arith.constant 0 : index
    %33 = vector.load %arg8[%c0_18, %c0_19] : memref<1x256xf32, #tpu.memory_space<vmem>>, vector<1x256xf32>
    %34 = arith.addf %32, %33 : vector<1x256xf32>
    %35 = vector.extract_strided_slice %34 {offsets = [0, 0], sizes = [1, 128], strides = [1, 1]} : vector<1x256xf32> to vector<1x128xf32>
    %36 = arith.mulf %35, %35 : vector<1x128xf32>
    %cst_20 = arith.constant dense<0.000000e+00> : vector<1xf32>
    %37 = vector.multi_reduction <add>, %36, %cst_20 [1] : vector<1x128xf32> to vector<1xf32>
    %38 = vector.shape_cast %37 : vector<1xf32> to vector<1x1xf32>
    %39 = math.rsqrt %38 : vector<1x1xf32>
    %40 = arith.mulf %39, %8 : vector<1x1xf32>
    %41 = vector.broadcast %40 : vector<1x1xf32> to vector<1x128xf32>
    %42 = arith.mulf %35, %41 : vector<1x128xf32>
    %43 = vector.extract_strided_slice %34 {offsets = [0, 128], sizes = [1, 128], strides = [1, 1]} : vector<1x256xf32> to vector<1x128xf32>
    %44 = arith.mulf %43, %43 : vector<1x128xf32>
    %cst_21 = arith.constant dense<0.000000e+00> : vector<1xf32>
    %45 = vector.multi_reduction <add>, %44, %cst_21 [1] : vector<1x128xf32> to vector<1xf32>
    %46 = vector.shape_cast %45 : vector<1xf32> to vector<1x1xf32>
    %47 = math.rsqrt %46 : vector<1x1xf32>
    %48 = arith.mulf %47, %8 : vector<1x1xf32>
    %49 = vector.broadcast %48 : vector<1x1xf32> to vector<1x128xf32>
    %50 = arith.mulf %43, %49 : vector<1x128xf32>
    %51 = tpu.concatenate %42, %50 in 1 : vector<1x128xf32>, vector<1x128xf32> -> vector<1x256xf32>
    %c0_22 = arith.constant 0 : index
    %c0_23 = arith.constant 0 : index
    %c0_24 = arith.constant 0 : index
    %52 = vector.load %arg9[%c0_22, %c0_23, %c0_24] : memref<1x1x256xf32, #tpu.memory_space<vmem>>, vector<1x1x256xf32>
    %53 = vector.shape_cast %52 : vector<1x1x256xf32> to vector<1x256xf32>
    %54 = vector.shape_cast %51 : vector<1x256xf32> to vector<1x1x256xf32>
    tpu.vector_store %arg9[%c0_22, %c0_23, %c0_24], %54 {strides = array<i32>} : memref<1x1x256xf32, #tpu.memory_space<vmem>>, vector<1x1x256xf32>,
    return
  }
  func.func @transform_0(%arg0: i32) -> i32 {
    %c0_i32 = arith.constant 0 : i32
    %c0_i32_0 = arith.constant 0 : i32
    return %c0_i32 : i32
  }
  func.func @transform_1(%arg0: i32) -> (i32, i32, i32) {
    %c0_i32 = arith.constant 0 : i32
    %c0_i32_0 = arith.constant 0 : i32
    %c0_i32_1 = arith.constant 0 : i32
    return %arg0, %c0_i32, %c0_i32_0 : i32, i32, i32
  }
  func.func @transform_2(%arg0: i32) -> (i32, i32) {
    %c0_i32 = arith.constant 0 : i32
    %c0_i32_0 = arith.constant 0 : i32
    %c0_i32_1 = arith.constant 0 : i32
    return %c0_i32, %c0_i32_0 : i32, i32
  }
  func.func @transform_3(%arg0: i32) -> (i32, i32) {
    %c0_i32 = arith.constant 0 : i32
    %c0_i32_0 = arith.constant 0 : i32
    %c0_i32_1 = arith.constant 0 : i32
    return %c0_i32, %c0_i32_0 : i32, i32
  }
  func.func @transform_4(%arg0: i32) -> (i32, i32) {
    %c0_i32 = arith.constant 0 : i32
    %c0_i32_0 = arith.constant 0 : i32
    %c0_i32_1 = arith.constant 0 : i32
    return %c0_i32, %c0_i32_0 : i32, i32
  }
  func.func @transform_5(%arg0: i32) -> (i32, i32) {
    %c0_i32 = arith.constant 0 : i32
    %c0_i32_0 = arith.constant 0 : i32
    %c0_i32_1 = arith.constant 0 : i32
    return %c0_i32, %c0_i32_0 : i32, i32
  }
  func.func @transform_6(%arg0: i32) -> (i32, i32) {
    %c0_i32 = arith.constant 0 : i32
    %c0_i32_0 = arith.constant 0 : i32
    %c0_i32_1 = arith.constant 0 : i32
    return %c0_i32, %c0_i32_0 : i32, i32
  }
  func.func @transform_7(%arg0: i32) -> (i32, i32) {
    %c0_i32 = arith.constant 0 : i32
    %c0_i32_0 = arith.constant 0 : i32
    %c0_i32_1 = arith.constant 0 : i32
    return %c0_i32, %c0_i32_0 : i32, i32
  }
  func.func @transform_8(%arg0: i32) -> (i32, i32, i32) {
    %c0_i32 = arith.constant 0 : i32
    %c0_i32_0 = arith.constant 0 : i32
    %c0_i32_1 = arith.constant 0 : i32
    return %arg0, %c0_i32, %c0_i32_0 : i32, i32, i32
  }
}

</mosaic_0001>

<llo_original>
// kernel: tpu_custom_call.1
$region0: #{tpu_custom_call.1}
  #allocation0 [shape = 'u32[]', space=smem, size = 0x4, offset = 0x4, fixed_abs, tag = 'smem constant byte address 0x4 - core index']
  #allocation1 [shape = 'u32[144,128]{1,0:T(1,128)}', space=vmem, size = 0x12000, scoped, tag = 'internal scratch']
  #allocation2 [shape = 'f32[1]{0:T(128)S(6)}', space=smem, size = 0x200, scoped, tag = 'scoped memory for tpu_custom_call.1']
  %s0 = inlined_call_operand.<no memory space> [shape: f32[1], index: 0, kind: input, shape index: {}]
  %s1 = inlined_call_operand.vmem [shape: bf16[1,1,16], index: 1, kind: input, shape index: {}]
  %s2 = inlined_call_operand.hbm [shape: bf16[16,128], index: 2, kind: input, shape index: {}]
  %s3 = inlined_call_operand.vmem [shape: f32[1,128], index: 3, kind: input, shape index: {}]
  %s4 = inlined_call_operand.hbm [shape: bf16[128,128], index: 4, kind: input, shape index: {}]
  %s5 = inlined_call_operand.vmem [shape: f32[1,128], index: 5, kind: input, shape index: {}]
  %s6 = inlined_call_operand.hbm [shape: bf16[128,256], index: 6, kind: input, shape index: {}]
  %s7 = inlined_call_operand.vmem [shape: f32[1,256], index: 7, kind: input, shape index: {}]
  %s8 = inlined_call_operand.hbm [shape: f32[1,1,256], index: 8, kind: output, shape index: {}]
  %s9 = sld [smem:[#allocation0]]
  $region54: #{tpu_custom_call.1} parent=0
    _
  %s11 = ssub.s32 1, %s9
  %s12 = scalar_select 0, %s11, %s9
  %13 = sst [smem:[#allocation2]] %s0
  $region1: #{tpu_custom_call.1} parent=0
    #allocation3 [shape = 'u8[4096]{0}', space=vmem, size = 0x1000, scoped, tag = 'input window, operand 2, single buffered']
    #allocation4 [shape = 's32[1]{0}', space=sflag, size = 0x4, scoped, tag = 'scoped memory for tpu_custom_call.1']
    #allocation5 [shape = 's32[1]{0}', space=sflag, size = 0x4, scoped, tag = 'scoped memory for tpu_custom_call.1']
    #allocation6 [shape = 'u8[32768]{0}', space=vmem, size = 0x8000, scoped, tag = 'input window, operand 4, single buffered']
    #allocation7 [shape = 's32[1]{0}', space=sflag, size = 0x4, scoped, tag = 'scoped memory for tpu_custom_call.1']
    #allocation8 [shape = 'u8[65536]{0}', space=vmem, size = 0x10000, scoped, tag = 'input window, operand 6, single buffered']
    #allocation9 [shape = 'u8[1024]{0}', space=vmem, size = 0x400, scoped, tag = 'output window, operand 0, single buffered']
    %14 = vsyncpa [#allocation4], 0
    %15 = vsyncpa [#allocation7], 0
    %16 = vsyncpa [#allocation5], 0
    // Predicated region
    $region2: #{tpu_custom_call.1} parent=1 // pred_check
      _
    $region3: #{tpu_custom_call.1} parent=1 // pred_check_branch
      %18 = sbr.rel (0) target = $region5
    $region4: #{tpu_custom_call.1} parent=1 // pred_region
      _
    $region5: #{tpu_custom_call.1} parent=1 // pred_fallthru
      _
    // Predicated region
    $region6: #{tpu_custom_call.1} parent=1 // pred_check
      _
    $region7: #{tpu_custom_call.1} parent=1 // pred_check_branch
      %20 = sbr.rel (0) target = $region9
    $region8: #{tpu_custom_call.1} parent=1 // pred_region
      _
    $region9: #{tpu_custom_call.1} parent=1 // pred_fallthru
      _
    // Predicated region
    $region10: #{tpu_custom_call.1} parent=1 // pred_check
      _
    $region11: #{tpu_custom_call.1} parent=1 // pred_check_branch
      %22 = sbr.rel (0) target = $region13
    $region12: #{tpu_custom_call.1} parent=1 // pred_region
      %s24 = ssub.s32 128, 128
      %25 = vsyncadd [#allocation4], %s24
      %s26 = sshll.u32 [#allocation3], 4
      %s27 = int_to_ptr.vmem [resolvable:$true] %s26
      %32 = dma.hbm_to_vmem [thread:$0]  %s2, 128, %s27, [#allocation4], 64, 64, 4
    $region13: #{tpu_custom_call.1} parent=1 // pred_fallthru
      _
    // Predicated region
    $region14: #{tpu_custom_call.1} parent=1 // pred_check
      _
    $region15: #{tpu_custom_call.1} parent=1 // pred_check_branch
      %34 = sbr.rel (0) target = $region17
    $region16: #{tpu_custom_call.1} parent=1 // pred_region
      _
    $region17: #{tpu_custom_call.1} parent=1 // pred_fallthru
      _
    // Predicated region
    $region18: #{tpu_custom_call.1} parent=1 // pred_check
      _
    $region19: #{tpu_custom_call.1} parent=1 // pred_check_branch
      %36 = sbr.rel (0) target = $region21
    $region20: #{tpu_custom_call.1} parent=1 // pred_region
      %s38 = ssub.s32 1024, 1024
      %39 = vsyncadd [#allocation7], %s38
      %s40 = sshll.u32 [#allocation6], 4
      %s41 = int_to_ptr.vmem [resolvable:$true] %s40
      %46 = dma.hbm_to_vmem [thread:$0]  %s4, 1024, %s41, [#allocation7], 64, 64, 4
    $region21: #{tpu_custom_call.1} parent=1 // pred_fallthru
      _
    // Predicated region
    $region22: #{tpu_custom_call.1} parent=1 // pred_check
      _
    $region23: #{tpu_custom_call.1} parent=1 // pred_check_branch
      %48 = sbr.rel (0) target = $region25
    $region24: #{tpu_custom_call.1} parent=1 // pred_region
      _
    $region25: #{tpu_custom_call.1} parent=1 // pred_fallthru
      _
    // Predicated region
    $region26: #{tpu_custom_call.1} parent=1 // pred_check
      _
    $region27: #{tpu_custom_call.1} parent=1 // pred_check_branch
      %50 = sbr.rel (0) target = $region29
    $region28: #{tpu_custom_call.1} parent=1 // pred_region
      %s52 = ssub.s32 2048, 2048
      %53 = vsyncadd [#allocation7], %s52
      %s54 = sshll.u32 [#allocation8], 4
      %s55 = int_to_ptr.vmem [resolvable:$true] %s54
      %60 = dma.hbm_to_vmem [thread:$0]  %s6, 2048, %s55, [#allocation7], 128, 128, 8
    $region29: #{tpu_custom_call.1} parent=1 // pred_fallthru
      _
    // Predicated region
    $region30: #{tpu_custom_call.1} parent=1 // pred_check
      _
    $region31: #{tpu_custom_call.1} parent=1 // pred_check_branch
      %62 = sbr.rel (0) target = $region33
    $region32: #{tpu_custom_call.1} parent=1 // pred_region
      _
    $region33: #{tpu_custom_call.1} parent=1 // pred_fallthru
      _
    // Predicated region
    $region34: #{tpu_custom_call.1} parent=1 // pred_check
      _
    $region35: #{tpu_custom_call.1} parent=1 // pred_check_branch
      %64 = sbr.rel (0) target = $region37
    $region36: #{tpu_custom_call.1} parent=1 // pred_region
      %65 = dma.done [#allocation4], 128
    $region37: #{tpu_custom_call.1} parent=1 // pred_fallthru
      _
    // Predicated region
    $region38: #{tpu_custom_call.1} parent=1 // pred_check
      _
    $region39: #{tpu_custom_call.1} parent=1 // pred_check_branch
      %67 = sbr.rel (0) target = $region41
    $region40: #{tpu_custom_call.1} parent=1 // pred_region
      %68 = dma.done [#allocation7], 1024
    $region41: #{tpu_custom_call.1} parent=1 // pred_fallthru
      _
    // Predicated region
    $region42: #{tpu_custom_call.1} parent=1 // pred_check
      _
    $region43: #{tpu_custom_call.1} parent=1 // pred_check_branch
      %70 = sbr.rel (0) target = $region45
    $region44: #{tpu_custom_call.1} parent=1 // pred_region
      %71 = dma.done [#allocation7], 2048
    $region45: #{tpu_custom_call.1} parent=1 // pred_fallthru
      _
    %s73 = sld [smem:[#allocation2]]
    %v74 = vstv %s73
    %v75 = vmul.f32 %v74, -0.5
    %v76 = vmul.f32 %v75, %v74
    %v77 = vmul.f32 %v76, 1.442695
    %v78 = vpow.pop %v77
    %v79 = vmul.f32 %v78, 7.9788456
    %v80 = vld [vmem:[%s1] sm:$0x1]
    %v81 = vld [vmem:[#allocation3] sm:$0xf]
    %v82 = vld [vmem:[#allocation3 + $0x4] sm:$0xf]
    %v83 = vld [vmem:[%s3] sm:$0x1]
    %v86 = vunpack.c.l.b16 %v81
    %v87 = vunpack.c.l.b16 %v82
    %v88 = vpack.c.b16 %v87, %v86
    %vm90 = vcmask 130048
    %v92 = vsel %vm90, %v80, 0
    %94 = vmatprep.subr.bf16.mxu0 0
    %95 = vmatpush1.bf16.msra.mxu0 %v88
    %96 = vmatprep.subr.bf16.mxu0 0
    %97 = vmatpush1.bf16.msra.mxu0 0
    %98 = vmatprep.subr.bf16.mxu0 0
    %99 = vmatpush1.bf16.msra.mxu0 0
    %100 = vmatprep.subr.bf16.mxu0 0
    %101 = vmatpush1.bf16.msra.mxu0 0
    %102 = vmatprep.subr.bf16.mxu0 0
    %103 = vmatpush1.bf16.msra.mxu0 0
    %104 = vmatprep.subr.bf16.mxu0 0
    %105 = vmatpush1.bf16.msra.mxu0 0
    %106 = vmatprep.subr.bf16.mxu0 0
    %107 = vmatpush1.bf16.msra.mxu0 0
    %108 = vmatprep.subr.bf16.mxu0 0
    %109 = vmatpush1.bf16.msra.mxu0 0
    %110 = vmatprep.subr.bf16.mxu0 0
    %111 = vmatpush1.bf16.msra.mxu0 0
    %112 = vmatprep.subr.bf16.mxu0 0
    %113 = vmatpush1.bf16.msra.mxu0 0
    %114 = vmatprep.subr.bf16.mxu0 0
    %115 = vmatpush1.bf16.msra.mxu0 0
    %116 = vmatprep.subr.bf16.mxu0 0
    %117 = vmatpush1.bf16.msra.mxu0 0
    %118 = vmatprep.subr.bf16.mxu0 0
    %119 = vmatpush1.bf16.msra.mxu0 0
    %120 = vmatprep.subr.bf16.mxu0 0
    %121 = vmatpush1.bf16.msra.mxu0 0
    %122 = vmatprep.subr.bf16.mxu0 0
    %123 = vmatpush1.bf16.msra.mxu0 0
    %124 = vmatprep.subr.bf16.mxu0 0
    %125 = vmatpush1.bf16.msra.mxu0 0
    %126 = vmatprep.mubr.bf16.mxu0 0
    %127 = vmatmul.mubr.bf16.gmra.mrb[0].mxu0 %v92
    %v128 = vpop.f32.mrb[0].mxu0
    %v129 = vadd.f32 %v83, %v128
    %v130 = vpop.f32.mrb[0].mxu0
    %v131 = vpop.f32.mrb[0].mxu0
    %v132 = vpop.f32.mrb[0].mxu0
    %133 = vdwg.mxu0
    %v134 = vxor.u32 %v129, 2147483648
    %v135 = vmul.f32 %v134, 1.442695
    %v136 = vpow.pop %v135
    %v137 = vadd.f32 %v136, 1.0
    %v138 = vrcp.pop %v137
    %v139 = vmul.f32 1.0, %v138
    %v140 = vpack.c.bf16 %v139, %v139
    %v141 = vld [vmem:[#allocation6] sm:$0xf]
    %v142 = vld [vmem:[#allocation6 + $0x4] sm:$0xf]
    %v143 = vld [vmem:[#allocation6 + $0x8] sm:$0xf]
    %v144 = vld [vmem:[#allocation6 + $0xc] sm:$0xf]
    %v145 = vld [vmem:[#allocation6 + $0x10] sm:$0xf]
    %v146 = vld [vmem:[#allocation6 + $0x14] sm:$0xf]
    %v147 = vld [vmem:[#allocation6 + $0x18] sm:$0xf]
    %v148 = vld [vmem:[#allocation6 + $0x1c] sm:$0xf]
    %v149 = vld [vmem:[#allocation6 + $0x20] sm:$0xf]
    %v150 = vld [vmem:[#allocation6 + $0x24] sm:$0xf]
    %v151 = vld [vmem:[#allocation6 + $0x28] sm:$0xf]
    %v152 = vld [vmem:[#allocation6 + $0x2c] sm:$0xf]
    %v153 = vld [vmem:[#allocation6 + $0x30] sm:$0xf]
    %v154 = vld [vmem:[#allocation6 + $0x34] sm:$0xf]
    %v155 = vld [vmem:[#allocation6 + $0x38] sm:$0xf]
    %v156 = vld [vmem:[#allocation6 + $0x3c] sm:$0xf]
    %v157 = vld [vmem:[%s5] sm:$0x1]
    %v174 = vunpack.c.l.b16 %v141
    %v175 = vunpack.c.l.b16 %v142
    %v176 = vunpack.c.l.b16 %v143
    %v177 = vunpack.c.l.b16 %v144
    %v178 = vunpack.c.l.b16 %v145
    %v179 = vunpack.c.l.b16 %v146
    %v180 = vunpack.c.l.b16 %v147
    %v181 = vunpack.c.l.b16 %v148
    %v182 = vunpack.c.l.b16 %v149
    %v183 = vunpack.c.l.b16 %v150
    %v184 = vunpack.c.l.b16 %v151
    %v185 = vunpack.c.l.b16 %v152
    %v186 = vunpack.c.l.b16 %v153
    %v187 = vunpack.c.l.b16 %v154
    %v188 = vunpack.c.l.b16 %v155
    %v189 = vunpack.c.l.b16 %v156
    %v190 = vpack.c.b16 %v175, %v174
    %v191 = vpack.c.b16 %v177, %v176
    %v192 = vpack.c.b16 %v179, %v178
    %v193 = vpack.c.b16 %v181, %v180
    %v194 = vpack.c.b16 %v183, %v182
    %v195 = vpack.c.b16 %v185, %v184
    %v196 = vpack.c.b16 %v187, %v186
    %v197 = vpack.c.b16 %v189, %v188
    %206 = vmatprep.subr.bf16.mxu0 0
    %207 = vmatpush1.bf16.msra.mxu0 %v190
    %208 = vmatprep.subr.bf16.mxu0 0
    %209 = vmatpush1.bf16.msra.mxu0 %v191
    %210 = vmatprep.subr.bf16.mxu0 0
    %211 = vmatpush1.bf16.msra.mxu0 %v192
    %212 = vmatprep.subr.bf16.mxu0 0
    %213 = vmatpush1.bf16.msra.mxu0 %v193
    %214 = vmatprep.subr.bf16.mxu0 0
    %215 = vmatpush1.bf16.msra.mxu0 %v194
    %216 = vmatprep.subr.bf16.mxu0 0
    %217 = vmatpush1.bf16.msra.mxu0 %v195
    %218 = vmatprep.subr.bf16.mxu0 0
    %219 = vmatpush1.bf16.msra.mxu0 %v196
    %220 = vmatprep.subr.bf16.mxu0 0
    %221 = vmatpush1.bf16.msra.mxu0 %v197
    %222 = vmatprep.subr.bf16.mxu0 0
    %223 = vmatpush1.bf16.msra.mxu0 0
    %224 = vmatprep.subr.bf16.mxu0 0
    %225 = vmatpush1.bf16.msra.mxu0 0
    %226 = vmatprep.subr.bf16.mxu0 0
    %227 = vmatpush1.bf16.msra.mxu0 0
    %228 = vmatprep.subr.bf16.mxu0 0
    %229 = vmatpush1.bf16.msra.mxu0 0
    %230 = vmatprep.subr.bf16.mxu0 0
    %231 = vmatpush1.bf16.msra.mxu0 0
    %232 = vmatprep.subr.bf16.mxu0 0
    %233 = vmatpush1.bf16.msra.mxu0 0
    %234 = vmatprep.subr.bf16.mxu0 0
    %235 = vmatpush1.bf16.msra.mxu0 0
    %236 = vmatprep.subr.bf16.mxu0 0
    %237 = vmatpush1.bf16.msra.mxu0 0
    %238 = vmatprep.mubr.bf16.mxu0 0
    %239 = vmatmul.mubr.bf16.gmra.mrb[0].mxu0 %v140
    %v240 = vpop.f32.mrb[0].mxu0
    %v241 = vadd.f32 %v157, %v240
    %v242 = vpop.f32.mrb[0].mxu0
    %v243 = vpop.f32.mrb[0].mxu0
    %v244 = vpop.f32.mrb[0].mxu0
    %245 = vdwg.mxu0
    %v246 = vxor.u32 %v241, 2147483648
    %v247 = vmul.f32 %v246, 1.442695
    %v248 = vpow.pop %v247
    %v249 = vadd.f32 %v248, 1.0
    %v250 = vrcp.pop %v249
    %v251 = vmul.f32 1.0, %v250
    %v252 = vpack.c.bf16 %v251, %v251
    %v253 = vld [vmem:[#allocation8] sm:$0xff]
    %v254 = vld [vmem:[#allocation8 + $0x8] sm:$0xff]
    %v255 = vld [vmem:[#allocation8 + $0x10] sm:$0xff]
    %v256 = vld [vmem:[#allocation8 + $0x18] sm:$0xff]
    %v257 = vld [vmem:[#allocation8 + $0x20] sm:$0xff]
    %v258 = vld [vmem:[#allocation8 + $0x28] sm:$0xff]
    %v259 = vld [vmem:[#allocation8 + $0x30] sm:$0xff]
    %v260 = vld [vmem:[#allocation8 + $0x38] sm:$0xff]
    %v261 = vld [vmem:[#allocation8 + $0x40] sm:$0xff]
    %v262 = vld [vmem:[#allocation8 + $0x48] sm:$0xff]
    %v263 = vld [vmem:[#allocation8 + $0x50] sm:$0xff]
    %v264 = vld [vmem:[#allocation8 + $0x58] sm:$0xff]
    %v265 = vld [vmem:[#allocation8 + $0x60] sm:$0xff]
    %v266 = vld [vmem:[#allocation8 + $0x68] sm:$0xff]
    %v267 = vld [vmem:[#allocation8 + $0x70] sm:$0xff]
    %v268 = vld [vmem:[#allocation8 + $0x78] sm:$0xff]
    %v269 = vld [vmem:[%s7] sm:$0x3]
    %v286 = vunpack.c.l.b16 %v253
    %v287 = vunpack.c.h.b16 %v253
    %v288 = vunpack.c.l.b16 %v254
    %v289 = vunpack.c.h.b16 %v254
    %v290 = vunpack.c.l.b16 %v255
    %v291 = vunpack.c.h.b16 %v255
    %v292 = vunpack.c.l.b16 %v256
    %v293 = vunpack.c.h.b16 %v256
    %v294 = vunpack.c.l.b16 %v257
    %v295 = vunpack.c.h.b16 %v257
    %v296 = vunpack.c.l.b16 %v258
    %v297 = vunpack.c.h.b16 %v258
    %v298 = vunpack.c.l.b16 %v259
    %v299 = vunpack.c.h.b16 %v259
    %v300 = vunpack.c.l.b16 %v260
    %v301 = vunpack.c.h.b16 %v260
    %v302 = vunpack.c.l.b16 %v261
    %v303 = vunpack.c.h.b16 %v261
    %v304 = vunpack.c.l.b16 %v262
    %v305 = vunpack.c.h.b16 %v262
    %v306 = vunpack.c.l.b16 %v263
    %v307 = vunpack.c.h.b16 %v263
    %v308 = vunpack.c.l.b16 %v264
    %v309 = vunpack.c.h.b16 %v264
    %v310 = vunpack.c.l.b16 %v265
    %v311 = vunpack.c.h.b16 %v265
    %v312 = vunpack.c.l.b16 %v266
    %v313 = vunpack.c.h.b16 %v266
    %v314 = vunpack.c.l.b16 %v267
    %v315 = vunpack.c.h.b16 %v267
    %v316 = vunpack.c.l.b16 %v268
    %v317 = vunpack.c.h.b16 %v268
    %v318 = vpack.c.b16 %v288, %v286
    %v319 = vpack.c.b16 %v289, %v287
    %v320 = vpack.c.b16 %v292, %v290
    %v321 = vpack.c.b16 %v293, %v291
    %v322 = vpack.c.b16 %v296, %v294
    %v323 = vpack.c.b16 %v297, %v295
    %v324 = vpack.c.b16 %v300, %v298
    %v325 = vpack.c.b16 %v301, %v299
    %v326 = vpack.c.b16 %v304, %v302
    %v327 = vpack.c.b16 %v305, %v303
    %v328 = vpack.c.b16 %v308, %v306
    %v329 = vpack.c.b16 %v309, %v307
    %v330 = vpack.c.b16 %v312, %v310
    %v331 = vpack.c.b16 %v313, %v311
    %v332 = vpack.c.b16 %v316, %v314
    %v333 = vpack.c.b16 %v317, %v315
    %v351 = vlaneseq
    %v352 = vshrl.u32 %v351, 7
    %v353 = vsub.s32 0, %v352
    %v354 = vrot.slane %v269, %v353
    %v355 = vlaneseq
    %v356 = vshrl.u32 %v355, 7
    %v357 = vsub.s32 1, %v356
    %v358 = vrot.slane %v269, %v357
    %361 = vmatprep.subr.bf16.mxu0 %v319
    %362 = vmatpush1.bf16.msra.mxu0 %v318
    %363 = vmatprep.subr.bf16.mxu0 %v321
    %364 = vmatpush1.bf16.msra.mxu0 %v320
    %365 = vmatprep.subr.bf16.mxu0 %v323
    %366 = vmatpush1.bf16.msra.mxu0 %v322
    %367 = vmatprep.subr.bf16.mxu0 %v325
    %368 = vmatpush1.bf16.msra.mxu0 %v324
    %369 = vmatprep.subr.bf16.mxu0 %v327
    %370 = vmatpush1.bf16.msra.mxu0 %v326
    %371 = vmatprep.subr.bf16.mxu0 %v329
    %372 = vmatpush1.bf16.msra.mxu0 %v328
    %373 = vmatprep.subr.bf16.mxu0 %v331
    %374 = vmatpush1.bf16.msra.mxu0 %v330
    %375 = vmatprep.subr.bf16.mxu0 %v333
    %376 = vmatpush1.bf16.msra.mxu0 %v332
    %377 = vmatprep.subr.bf16.mxu0 0
    %378 = vmatpush1.bf16.msra.mxu0 0
    %379 = vmatprep.subr.bf16.mxu0 0
    %380 = vmatpush1.bf16.msra.mxu0 0
    %381 = vmatprep.subr.bf16.mxu0 0
    %382 = vmatpush1.bf16.msra.mxu0 0
    %383 = vmatprep.subr.bf16.mxu0 0
    %384 = vmatpush1.bf16.msra.mxu0 0
    %385 = vmatprep.subr.bf16.mxu0 0
    %386 = vmatpush1.bf16.msra.mxu0 0
    %387 = vmatprep.subr.bf16.mxu0 0
    %388 = vmatpush1.bf16.msra.mxu0 0
    %389 = vmatprep.subr.bf16.mxu0 0
    %390 = vmatpush1.bf16.msra.mxu0 0
    %391 = vmatprep.subr.bf16.mxu0 0
    %392 = vmatpush1.bf16.msra.mxu0 0
    %393 = vmatprep.mubr.bf16.mxu0 0
    %394 = vmatmul.mubr.bf16.gmra.mrb[0].mxu0 %v252
    %v395 = vpop.f32.mrb[0].mxu0
    %v396 = vadd.f32 %v354, %v395
    %v397 = vpop.f32.mrb[0].mxu0
    %v398 = vadd.f32 %v358, %v397
    %v399 = vpop.f32.mrb[0].mxu0
    %v400 = vpop.f32.mrb[0].mxu0
    %401 = vdwg.mxu0
    %v402 = vmul.f32 %v396, %v396
    %vm403 = vcmask 1040384
    %v404 = vsel %vm403, %v402, 0.0
    %405 = vadd.xlane.f32.xlu0 %v404
    %v406 = vpop.xlane.xlu0 %405
    %v407 = vrsqrt.pop %v406
    %v408 = vmul.f32 %v407, %v79
    %v409 = vmul.f32 %v396, %v408
    %v410 = vmul.f32 %v398, %v398
    %v411 = vsel %vm403, %v410, 0.0
    %412 = vadd.xlane.f32.xlu0 %v411
    %v413 = vpop.xlane.xlu0 %412
    %v414 = vrsqrt.pop %v413
    %v415 = vmul.f32 %v414, %v79
    %v416 = vmul.f32 %v398, %v415
    %v419 = vcombine.low %v409, %v416
    %v421 = vunpack.c.l.s4 1966171168
    %v422 = vunpack.c.0.s8 %v421
    %v423 = vlaneseq
    %v424 = vshrl.u32 %v423, 7
    %v425 = vsub.s32 %v422, %v424
    %v426 = vrot.slane %v419, %v425
    %v428 = vunpack.c.l.s4 1966171168
    %v429 = vunpack.c.0.s8 %v428
    %v430 = vlaneseq
    %v431 = vshrl.u32 %v430, 7
    %v432 = vsub.s32 %v429, %v431
    %v433 = vrot.slane %v426, %v432
    %v435 = vlaneseq
    %vm436 = vcmp.ge.s32.totalorder %v435, 0
    %vm437 = vcmp.lt.s32.totalorder %v435, 256
    %vm438 = vmand %vm436, %vm437
    %439 = vst.msk [vmem:[#allocation9] sm:$0x3] %vm438, %v433
    // Predicated region
    $region46: #{tpu_custom_call.1} parent=1 // pred_check
      _
    $region47: #{tpu_custom_call.1} parent=1 // pred_check_branch
      %441 = sbr.rel (0) target = $region49
    $region48: #{tpu_custom_call.1} parent=1 // pred_region
      %s443 = ssub.s32 32, 32
      %444 = vsyncadd [#allocation5], %s443
      %s446 = sshll.u32 [#allocation9], 4
      %s447 = int_to_ptr.vmem [resolvable:$true] %s446
      %449 = dma.vmem_to_hbm [thread:$0]  %s447, 32, %s8, [#allocation5]
    $region49: #{tpu_custom_call.1} parent=1 // pred_fallthru
      _
    // Predicated region
    $region50: #{tpu_custom_call.1} parent=1 // pred_check
      _
    $region51: #{tpu_custom_call.1} parent=1 // pred_check_branch
      %451 = sbr.rel (0) target = $region53
    $region52: #{tpu_custom_call.1} parent=1 // pred_region
      %452 = dma.done [#allocation5], 32
    $region53: #{tpu_custom_call.1} parent=1 // pred_fallthru
      _
    %453 = vsyncpa [#allocation4], 1
    %454 = vsyncpa [#allocation7], 1
    %455 = vsyncpa [#allocation5], 1

</llo_original>
